<compile_context>
chip_gen: v7x
topology: tpu7x:2x2x1
jax: 0.10.0
libtpu: 0.0.40
codegen_flags: <defaults>
</compile_context>

<pallas_src>
import functools

import jax
import jax.numpy as jnp
from jax.experimental import pallas as pl
from jax.experimental.pallas import tpu as pltpu

_NEG_LARGE = -1e30
_LANE = 128


def _round_up(n: int, m: int) -> int:
    return ((n + m - 1) // m) * m


def _predictor_kernel(x_ref, w_ref, b_ref, o_ref, *, num_classes, padded_classes,
                      compute_dtype):
    # x_ref: [tb, K]   w_ref: [Np, K]   b_ref: [1, Np] (f32)   o_ref: [tb, Np]
    xv = x_ref[...].astype(compute_dtype)
    wv = w_ref[...].astype(compute_dtype)
    # logits = x @ W.T + b, accumulated in f32 on the MXU (no weight transpose).
    logits = jax.lax.dot_general(
        xv, wv,
        dimension_numbers=(((1,), (1,)), ((), ())),
        preferred_element_type=jnp.float32,
    )
    logits = logits + b_ref[...]

    if padded_classes != num_classes:
        col = jax.lax.broadcasted_iota(jnp.int32, logits.shape, dimension=1)
        logits = jnp.where(col < num_classes, logits, _NEG_LARGE)

    # Numerically-stable softmax over the class axis.
    m = jnp.max(logits, axis=-1, keepdims=True)
    e = jnp.exp(logits - m)
    s = jnp.sum(e, axis=-1, keepdims=True)
    o_ref[...] = (e / s).astype(o_ref.dtype)


def fasd_predictor_forward(x: jax.Array, w: jax.Array, b: jax.Array, *,
                           block_b: int | None = None,
                           compute_dtype=jnp.bfloat16) -> jax.Array:
    """softmax(x @ w.T + b, axis=-1).

    x: [B, input_dim]; w: [num_classes, input_dim] (PyTorch Linear layout);
    b: [num_classes].
    """
    B, K = x.shape
    C, Kw = w.shape
    assert Kw == K and b.shape == (C,)
    out_dtype = x.dtype

    # --- pad class dim to a lane-dense multiple of 128 (unmasked vst stores). ---
    Np = _round_up(max(C, _LANE), _LANE)
    if Np != C:
        w = jnp.pad(w, ((0, Np - C), (0, 0)))
        b = jnp.pad(b, (0, Np - C))
    b2 = b.reshape(1, Np).astype(jnp.float32)

    # --- batch tile selection ---------------------------------------------------
    itemsize = min(jnp.dtype(x.dtype).itemsize, jnp.dtype(w.dtype).itemsize,
                   jnp.dtype(out_dtype).itemsize)
    sub = 8 if itemsize >= 4 else 16   # sublane multiple for the narrowest dtype

    if block_b is None:
        block_b = 512                  # ~85% of HBM roofline per measured data
    block_b = max(sub, min(_round_up(block_b, sub), _round_up(B, sub)))

    # Prefer >= 2 grid steps when possible so "parallel" actually shards across
    # the 2 TensorCores on v7x (and enables DMA/compute overlap everywhere).
    if B <= block_b and B >= 2 * sub:
        block_b = max(sub, _round_up(-(-B // 2), sub))

    # Shrink the tile until the double-buffered footprint fits a conservative
    # 24 MiB budget (safe under v7x's 32 MiB scoped / 64 MiB physical VMEM).
    xb = jnp.dtype(x.dtype).itemsize
    wb = jnp.dtype(w.dtype).itemsize
    ob = jnp.dtype(out_dtype).itemsize
    budget = 24 * 1024 * 1024

    def footprint(tb):
        return (2 * tb * K * xb          # x tile, double-buffered
                + 2 * tb * Np * ob       # out tile, double-buffered
                + 2 * K * Np * wb        # resident weight (2 buffers allocated)
                + 2 * Np * 4)            # bias

    while block_b > sub and footprint(block_b) > budget:
        block_b = max(sub, _round_up(block_b // 2, sub))

    # --- pad ragged batch so the grid tiles it exactly. --------------------------
    B_pad = _round_up(B, block_b)
    if B_pad != B:
        x = jnp.pad(x, ((0, B_pad - B), (0, 0)))
    grid = (B_pad // block_b,)

    kernel = functools.partial(
        _predictor_kernel, num_classes=C, padded_classes=Np,
        compute_dtype=compute_dtype)

    cost = pl.CostEstimate(
        flops=2 * B_pad * K * Np + 6 * B_pad * Np,
        transcendentals=B_pad * Np,
        bytes_accessed=B_pad * K * xb + Np * K * wb + Np * 4 + B_pad * Np * ob,
    )

    out = pl.pallas_call(
        kernel,
        out_shape=jax.ShapeDtypeStruct((B_pad, Np), out_dtype),
        grid_spec=pltpu.PrefetchScalarGridSpec(
            num_scalar_prefetch=0,
            grid=grid,
            in_specs=[
                pl.BlockSpec((block_b, K), lambda i: (i, 0)),   # x: tiled over batch
                pl.BlockSpec((Np, K), lambda i: (0, 0)),        # W: resident
                pl.BlockSpec((1, Np), lambda i: (0, 0)),        # bias: resident
            ],
            out_specs=pl.BlockSpec((block_b, Np), lambda i: (i, 0)),
        ),
        compiler_params=pltpu.CompilerParams(
            dimension_semantics=("parallel",),
            vmem_limit_bytes=32 * 1024 * 1024,
        ),
        cost_estimate=cost,
    )(x, w, b2)

    # Strip batch padding and padded (masked) classes.
    return out[:B, :C]


def fasd_predictor_ref(x, w, b):
    logits = jnp.dot(x, w.T, precision=jax.lax.Precision.HIGHEST) + b
    return jax.nn.softmax(logits, axis=-1)


if __name__ == "__main__":
    key = jax.random.PRNGKey(0)
    kx, kw, kb, kx2 = jax.random.split(key, 4)

    input_dim = 32
    num_classes = 10

    # Deterministic Kaiming-uniform-ish init matching nn.Linear's layout.
    bound = 1.0 / (input_dim ** 0.5)
    w = jax.random.uniform(kw, (num_classes, input_dim), dtype=jnp.float32,
                           minval=-bound, maxval=bound)
    b = jax.random.uniform(kb, (num_classes,), dtype=jnp.float32,
                           minval=-bound, maxval=bound)

    # Case 1: tiny batch, exact f32 compute path.
    x1 = jax.random.normal(kx, (8, input_dim), dtype=jnp.float32)
    out1 = jax.block_until_ready(
        fasd_predictor_forward(x1, w, b, compute_dtype=jnp.float32))
    ref1 = fasd_predictor_ref(x1, w, b)
    assert out1.shape == (8, num_classes)
    assert jnp.allclose(out1, ref1, atol=1e-4, rtol=1e-4), "f32 mismatch vs reference"
    assert jnp.allclose(out1.sum(axis=-1), 1.0, atol=1e-4), "softmax rows must sum to 1"

    # Case 2: ragged batch (exercises batch padding + >=2 grid steps) with the
    # default bf16 MXU path (f32 accumulation).
    x2 = jax.random.normal(kx2, (300, input_dim), dtype=jnp.float32)
    out2 = jax.block_until_ready(fasd_predictor_forward(x2, w, b))
    ref2 = fasd_predictor_ref(x2, w, b)
    assert out2.shape == (300, num_classes)
    assert jnp.allclose(out2, ref2, atol=2e-2), "bf16 mismatch vs reference"
    assert jnp.allclose(out2.sum(axis=-1), 1.0, atol=1e-2), "softmax rows must sum to 1"

    # TODO(synk): FASD_Predictor.predict / one_hot_from_probs is host-side pandas
    # glue (argmax one-hot on a DataFrame) and is not part of forward(); not ported.

    print("KERNEL_OK")
</pallas_src>

<mosaic_0001>
module attributes {stable_mosaic.version = 11 : i64} {
  func.func @_predictor_kernel(%arg0: i32, %arg1: memref<8x32xf32, #tpu.memory_space<vmem>>, %arg2: memref<128x32xf32, #tpu.memory_space<vmem>>, %arg3: memref<1x128xf32, #tpu.memory_space<vmem>>, %arg4: memref<8x128xf32, #tpu.memory_space<vmem>>) attributes {dimension_semantics = [#tpu.dimension_semantics<parallel>], iteration_bounds = array<i64: 1>, scalar_prefetch = 0 : i64, scratch_operands = 0 : i64, tpu.core_type = #tpu.core_type<tc>, window_params = [{transform_indices = @transform_0, window_bounds = array<i64: 8, 32>}, {pipeline_mode = #tpu.pipeline_mode<synchronous>, transform_indices = @transform_1, window_bounds = array<i64: 128, 32>}, {pipeline_mode = #tpu.pipeline_mode<synchronous>, transform_indices = @transform_2, window_bounds = array<i64: 1, 128>}, {transform_indices = @transform_3, window_bounds = array<i64: 8, 128>}]} {
    %c0 = arith.constant 0 : index
    %c0_0 = arith.constant 0 : index
    %0 = vector.load %arg1[%c0, %c0_0] : memref<8x32xf32, #tpu.memory_space<vmem>>, vector<8x32xf32>
    %c0_1 = arith.constant 0 : index
    %c0_2 = arith.constant 0 : index
    %1 = vector.load %arg2[%c0_1, %c0_2] : memref<128x32xf32, #tpu.memory_space<vmem>>, vector<128x32xf32>
    %cst = arith.constant dense<0.000000e+00> : vector<8x128xf32>
    %2 = tpu.matmul %0, %1, %cst {dimension_numbers = #tpu.dot_dimension_numbers<[1], [1], [0], [0], [0, 0, 1, 0], [], []>} : vector<8x32xf32>, vector<128x32xf32>, vector<8x128xf32> -> vector<8x128xf32>
    %c0_3 = arith.constant 0 : index
    %c0_4 = arith.constant 0 : index
    %3 = vector.load %arg3[%c0_3, %c0_4] : memref<1x128xf32, #tpu.memory_space<vmem>>, vector<1x128xf32>
    %4 = vector.broadcast %3 : vector<1x128xf32> to vector<8x128xf32>
    %5 = arith.addf %2, %4 : vector<8x128xf32>
    %6 = tpu.iota {dimensions = array<i32: 1>} : vector<8x128xi32>
    %c10_i32 = arith.constant 10 : i32
    %7 = vector.broadcast %c10_i32 : i32 to vector<8x128xi32>
    %8 = arith.cmpi slt, %6, %7 : vector<8x128xi32>
    %cst_5 = arith.constant -1.000000e+30 : f32
    %9 = vector.broadcast %cst_5 : f32 to vector<8x128xf32>
    %10 = arith.select %8, %5, %9 : vector<8x128xi1>, vector<8x128xf32>
    %cst_6 = arith.constant dense<0xFF800000> : vector<8xf32>
    %11 = vector.multi_reduction <maximumf>, %10, %cst_6 [1] : vector<8x128xf32> to vector<8xf32>
    %12 = vector.shape_cast %11 : vector<8xf32> to vector<8x1xf32>
    %13 = vector.broadcast %12 : vector<8x1xf32> to vector<8x128xf32>
    %14 = arith.subf %10, %13 : vector<8x128xf32>
    %15 = math.exp %14 : vector<8x128xf32>
    %cst_7 = arith.constant dense<0.000000e+00> : vector<8xf32>
    %16 = vector.multi_reduction <add>, %15, %cst_7 [1] : vector<8x128xf32> to vector<8xf32>
    %17 = vector.shape_cast %16 : vector<8xf32> to vector<8x1xf32>
    %18 = vector.broadcast %17 : vector<8x1xf32> to vector<8x128xf32>
    %19 = arith.divf %15, %18 : vector<8x128xf32>
    %c0_8 = arith.constant 0 : index
    %c0_9 = arith.constant 0 : index
    %20 = vector.load %arg4[%c0_8, %c0_9] : memref<8x128xf32, #tpu.memory_space<vmem>>, vector<8x128xf32>
    tpu.vector_store %arg4[%c0_8, %c0_9], %19 {strides = array<i32>} : memref<8x128xf32, #tpu.memory_space<vmem>>, vector<8x128xf32>,
    return
  }
  func.func @transform_0(%arg0: i32) -> (i32, i32) {
    %c0_i32 = arith.constant 0 : i32
    %c0_i32_0 = arith.constant 0 : i32
    return %arg0, %c0_i32 : i32, i32
  }
  func.func @transform_1(%arg0: i32) -> (i32, i32) {
    %c0_i32 = arith.constant 0 : i32
    %c0_i32_0 = arith.constant 0 : i32
    %c0_i32_1 = arith.constant 0 : i32
    return %c0_i32, %c0_i32_0 : i32, i32
  }
  func.func @transform_2(%arg0: i32) -> (i32, i32) {
    %c0_i32 = arith.constant 0 : i32
    %c0_i32_0 = arith.constant 0 : i32
    %c0_i32_1 = arith.constant 0 : i32
    return %c0_i32, %c0_i32_0 : i32, i32
  }
  func.func @transform_3(%arg0: i32) -> (i32, i32) {
    %c0_i32 = arith.constant 0 : i32
    %c0_i32_0 = arith.constant 0 : i32
    return %arg0, %c0_i32 : i32, i32
  }
}

</mosaic_0001>

<llo_original>
// kernel: tpu_custom_call.1
$region0: #{tpu_custom_call.1}
  #allocation0 [shape = 'u32[]', space=smem, size = 0x4, offset = 0x4, fixed_abs, tag = 'smem constant byte address 0x4 - core index']
  #allocation1 [shape = 'u32[144,128]{1,0:T(1,128)}', space=vmem, size = 0x12000, scoped, tag = 'internal scratch']
  %s0 = inlined_call_operand.vmem [shape: f32[8,32], index: 0, kind: input, shape index: {}]
  %s1 = inlined_call_operand.vmem [shape: f32[128,32], index: 1, kind: input, shape index: {}]
  %s2 = inlined_call_operand.vmem [shape: f32[1,128], index: 2, kind: input, shape index: {}]
  %s3 = inlined_call_operand.hbm [shape: f32[8,128], index: 3, kind: output, shape index: {}]
  %s4 = sld [smem:[#allocation0]]
  $region22: #{tpu_custom_call.1} parent=0
    _
  %s6 = ssub.s32 1, %s4
  %s7 = scalar_select 0, %s6, %s4
  $region1: #{tpu_custom_call.1} parent=0
    #allocation2 [shape = 'u8[4096]{0}', space=vmem, size = 0x1000, scoped, tag = 'output window, operand 0, single buffered']
    #allocation3 [shape = 's32[1]{0}', space=sflag, size = 0x4, scoped, tag = 'scoped memory for tpu_custom_call.1']
    %8 = vsyncpa [#allocation3], 0
    // Predicated region
    $region2: #{tpu_custom_call.1} parent=1 // pred_check
      _
    $region3: #{tpu_custom_call.1} parent=1 // pred_check_branch
      %10 = sbr.rel (0) target = $region5
    $region4: #{tpu_custom_call.1} parent=1 // pred_region
      _
    $region5: #{tpu_custom_call.1} parent=1 // pred_fallthru
      _
    // Predicated region
    $region6: #{tpu_custom_call.1} parent=1 // pred_check
      _
    $region7: #{tpu_custom_call.1} parent=1 // pred_check_branch
      %12 = sbr.rel (0) target = $region9
    $region8: #{tpu_custom_call.1} parent=1 // pred_region
      _
    $region9: #{tpu_custom_call.1} parent=1 // pred_fallthru
      _
    // Predicated region
    $region10: #{tpu_custom_call.1} parent=1 // pred_check
      _
    $region11: #{tpu_custom_call.1} parent=1 // pred_check_branch
      %14 = sbr.rel (0) target = $region13
    $region12: #{tpu_custom_call.1} parent=1 // pred_region
      _
    $region13: #{tpu_custom_call.1} parent=1 // pred_fallthru
      _
    %v15 = vld [vmem:[%s0] sm:$0xff]
    %v16 = vld [vmem:[%s1] sm:$0xff]
    %v17 = vld [vmem:[%s1 + $0x8] sm:$0xff]
    %v18 = vld [vmem:[%s1 + $0x10] sm:$0xff]
    %v19 = vld [vmem:[%s1 + $0x18] sm:$0xff]
    %v20 = vld [vmem:[%s1 + $0x20] sm:$0xff]
    %v21 = vld [vmem:[%s1 + $0x28] sm:$0xff]
    %v22 = vld [vmem:[%s1 + $0x30] sm:$0xff]
    %v23 = vld [vmem:[%s1 + $0x38] sm:$0xff]
    %v24 = vld [vmem:[%s1 + $0x40] sm:$0xff]
    %v25 = vld [vmem:[%s1 + $0x48] sm:$0xff]
    %v26 = vld [vmem:[%s1 + $0x50] sm:$0xff]
    %v27 = vld [vmem:[%s1 + $0x58] sm:$0xff]
    %v28 = vld [vmem:[%s1 + $0x60] sm:$0xff]
    %v29 = vld [vmem:[%s1 + $0x68] sm:$0xff]
    %v30 = vld [vmem:[%s1 + $0x70] sm:$0xff]
    %v31 = vld [vmem:[%s1 + $0x78] sm:$0xff]
    %v32 = vld [vmem:[%s2] sm:$0x1]
    %v34 = vlaneseq
    %v35 = vshrl.u32 %v34, 7
    %v36 = vsub.s32 0, %v35
    %v37 = vrot.slane %v32, %v36
    %vm39 = vcmask 261120
    %v41 = vsel %vm39, %v15, 0
    %v44 = vsel %vm39, %v16, 0
    %v47 = vsel %vm39, %v17, 0
    %v50 = vsel %vm39, %v18, 0
    %v53 = vsel %vm39, %v19, 0
    %v56 = vsel %vm39, %v20, 0
    %v59 = vsel %vm39, %v21, 0
    %v62 = vsel %vm39, %v22, 0
    %v65 = vsel %vm39, %v23, 0
    %v68 = vsel %vm39, %v24, 0
    %v71 = vsel %vm39, %v25, 0
    %v74 = vsel %vm39, %v26, 0
    %v77 = vsel %vm39, %v27, 0
    %v80 = vsel %vm39, %v28, 0
    %v83 = vsel %vm39, %v29, 0
    %v86 = vsel %vm39, %v30, 0
    %v89 = vsel %vm39, %v31, 0
    %91 = vmatprep.subr.mxu0 0.0
    %92 = vmatpush1.xpose.msra.mxu0 %v44
    %93 = vmatprep.subr.mxu0 0.0
    %94 = vmatpush1.xpose.msra.mxu0 %v47
    %95 = vmatprep.subr.mxu0 0.0
    %96 = vmatpush1.xpose.msra.mxu0 %v50
    %97 = vmatprep.subr.mxu0 0.0
    %98 = vmatpush1.xpose.msra.mxu0 %v53
    %99 = vmatprep.subr.mxu0 0.0
    %100 = vmatpush1.xpose.msra.mxu0 %v56
    %101 = vmatprep.subr.mxu0 0.0
    %102 = vmatpush1.xpose.msra.mxu0 %v59
    %103 = vmatprep.subr.mxu0 0.0
    %104 = vmatpush1.xpose.msra.mxu0 %v62
    %105 = vmatprep.subr.mxu0 0.0
    %106 = vmatpush1.xpose.msra.mxu0 %v65
    %107 = vmatprep.subr.mxu0 0.0
    %108 = vmatpush1.xpose.msra.mxu0 %v68
    %109 = vmatprep.subr.mxu0 0.0
    %110 = vmatpush1.xpose.msra.mxu0 %v71
    %111 = vmatprep.subr.mxu0 0.0
    %112 = vmatpush1.xpose.msra.mxu0 %v74
    %113 = vmatprep.subr.mxu0 0.0
    %114 = vmatpush1.xpose.msra.mxu0 %v77
    %115 = vmatprep.subr.mxu0 0.0
    %116 = vmatpush1.xpose.msra.mxu0 %v80
    %117 = vmatprep.subr.mxu0 0.0
    %118 = vmatpush1.xpose.msra.mxu0 %v83
    %119 = vmatprep.subr.mxu0 0.0
    %120 = vmatpush1.xpose.msra.mxu0 %v86
    %121 = vmatprep.subr.mxu0 0.0
    %122 = vmatpush1.xpose.msra.mxu0 %v89
    %123 = vmatprep.subr.mxu0 0.0
    %124 = vmatpush1.xpose.msra.mxu0 0.0
    %125 = vmatprep.subr.mxu0 0.0
    %126 = vmatpush1.xpose.msra.mxu0 0.0
    %127 = vmatprep.subr.mxu0 0.0
    %128 = vmatpush1.xpose.msra.mxu0 0.0
    %129 = vmatprep.subr.mxu0 0.0
    %130 = vmatpush1.xpose.msra.mxu0 0.0
    %131 = vmatprep.subr.mxu0 0.0
    %132 = vmatpush1.xpose.msra.mxu0 0.0
    %133 = vmatprep.subr.mxu0 0.0
    %134 = vmatpush1.xpose.msra.mxu0 0.0
    %135 = vmatprep.subr.mxu0 0.0
    %136 = vmatpush1.xpose.msra.mxu0 0.0
    %137 = vmatprep.subr.mxu0 0.0
    %138 = vmatpush1.xpose.msra.mxu0 0.0
    %139 = vmatprep.subr.mxu0 0.0
    %140 = vmatpush1.xpose.msra.mxu0 0.0
    %141 = vmatprep.subr.mxu0 0.0
    %142 = vmatpush1.xpose.msra.mxu0 0.0
    %143 = vmatprep.subr.mxu0 0.0
    %144 = vmatpush1.xpose.msra.mxu0 0.0
    %145 = vmatprep.subr.mxu0 0.0
    %146 = vmatpush1.xpose.msra.mxu0 0.0
    %147 = vmatprep.subr.mxu0 0.0
    %148 = vmatpush1.xpose.msra.mxu0 0.0
    %149 = vmatprep.subr.mxu0 0.0
    %150 = vmatpush1.xpose.msra.mxu0 0.0
    %151 = vmatprep.subr.mxu0 0.0
    %152 = vmatpush1.xpose.msra.mxu0 0.0
    %153 = vmatprep.subr.mxu0 0.0
    %154 = vmatpush1.xpose.msra.mxu0 0.0
    %155 = vmatprep.mubr.f32.mxu0 0.0
    %156 = vmatmul.mubr.f32.gmra.mrb[0].mxu0 %v41
    %v157 = vpop.f32.mrb[0].mxu0
    %v158 = vadd.f32 %v37, %v157
    %v159 = vpop.f32.mrb[0].mxu0
    %160 = vdwg.mxu0
    %v161 = vlaneseq
    %v162 = vand.u32 %v161, 127
    %vm163 = vcmp.lt.s32.totalorder %v162, 10
    %v164 = vsel %vm163, %v158, -1e+30
    %165 = vmax.xlane.f32.xlu0 %v164
    %v166 = vpop.xlane.xlu0 %165
    %v167 = vsub.f32 %v164, %v166
    %v168 = vmul.f32 %v167, 1.442695
    %v169 = vpow.pop %v168
    %170 = vadd.xlane.f32.xlu0 %v169
    %v171 = vpop.xlane.xlu0 %170
    %v172 = vrcp.pop %v171
    %v173 = vmul.f32 %v169, %v172
    %174 = vst [vmem:[#allocation2] sm:$0xff] %v173
    // Predicated region
    $region14: #{tpu_custom_call.1} parent=1 // pred_check
      _
    $region15: #{tpu_custom_call.1} parent=1 // pred_check_branch
      %176 = sbr.rel (0) target = $region17
    $region16: #{tpu_custom_call.1} parent=1 // pred_region
      %s178 = ssub.s32 128, 128
      %179 = vsyncadd [#allocation3], %s178
      %s181 = sshll.u32 [#allocation2], 4
      %s182 = int_to_ptr.vmem [resolvable:$true] %s181
      %184 = dma.vmem_to_hbm [thread:$0]  %s182, 128, %s3, [#allocation3]
    $region17: #{tpu_custom_call.1} parent=1 // pred_fallthru
      _
    // Predicated region
    $region18: #{tpu_custom_call.1} parent=1 // pred_check
      _
    $region19: #{tpu_custom_call.1} parent=1 // pred_check_branch
      %186 = sbr.rel (0) target = $region21
    $region20: #{tpu_custom_call.1} parent=1 // pred_region
      %187 = dma.done [#allocation3], 128
    $region21: #{tpu_custom_call.1} parent=1 // pred_fallthru
      _
    %188 = vsyncpa [#allocation3], 1

</llo_original>
